<compile_context>
chip_gen: v5e
topology: v5e:2x2
jax: 0.10.0
libtpu: 0.0.40
codegen_flags: <defaults>
</compile_context>

<pallas_src>
import functools

import jax
import jax.numpy as jnp
from jax import lax
from jax.experimental import pallas as pl
from jax.experimental.pallas import tpu as pltpu


# ----------------------------- sizing helpers -------------------------------

def _round_up(x, m):
    return ((x + m - 1) // m) * m


def _tpu_vmem_capacity_and_cores():
    """Generation-aware VMEM capacity (bytes) and #TensorCores heuristic."""
    cap = 64 * 1024 * 1024                      # conservative fallback (v7x per-TC VMEM)
    try:
        info = pltpu.get_tpu_info()
        cap = int(getattr(info, "vmem_capacity_bytes", cap))
    except Exception:
        pass
    cores = 1
    try:
        kind = jax.devices()[0].device_kind.lower()
        if any(t in kind for t in ("v7", "tpu7", "v4", "v5p")):
            cores = 2                           # dual-TensorCore / megacore generations
    except Exception:
        pass
    return cap, max(cores, 1)


def _per_graph_bytes(n_pad, f0, p_list, mx_bytes, out_bytes):
    """Per-graph VMEM bytes: double-buffered streams + per-graph scratch share."""
    p_mid = max(p_list[1:])
    p_last = p_list[-1]
    stream = 2 * (n_pad * n_pad * mx_bytes        # adjacency (mx dtype)
                  + n_pad * f0 * 4                # x (f32, natural width)
                  + n_pad * p_last * out_bytes)   # output
    scratch = (n_pad * n_pad * mx_bytes           # normalized adjacency
               + 2 * n_pad * p_mid * mx_bytes)    # xw + inter-layer activations
    return stream + scratch


def _fixed_bytes(n_pad, p_list, mx_bytes):
    """Block-invariant VMEM bytes: weights/biases (double-buffered) + live f32 temps."""
    wts = 0
    for i in range(len(p_list) - 1):
        wts += p_list[i] * p_list[i + 1] * mx_bytes + p_list[i + 1] * 4
    temps = 4 * (3 * n_pad * n_pad + 4 * n_pad * max(p_list))
    return 2 * wts + temps


def _choose_graphs_per_block(batch, per_graph, fixed, budget, num_cores):
    best = 1
    for cand in range(1, min(batch, 32) + 1):
        if fixed + cand * per_graph > budget:
            break
        steps = -(-batch // cand)
        if batch >= num_cores and steps < num_cores:
            break                               # keep every TensorCore fed (v7x)
        if 4 * (steps * cand - batch) > batch:
            continue                            # >25% dummy-graph padding: not worth it
        best = cand
    return best


# --------------------------------- kernel -----------------------------------

def _fused_gcn_kernel(nvalid_ref, x_ref, adj_ref, *rest,
                      graphs_per_block, num_layers, apply_act):
    """Fused multi-layer dense GCN for `graphs_per_block` graphs per grid step.

    rest = (w_0, b_0, ..., w_{L-1}, b_{L-1}, out_ref, adjn_ref, xw_ref, h_ref)
    """
    wb = rest[:2 * num_layers]
    o_ref = rest[2 * num_layers]
    adjn_ref, xw_ref, h_ref = rest[2 * num_layers + 1:]

    bt = graphs_per_block
    n = adj_ref.shape[1]
    blk = pl.program_id(0)
    f32 = jnp.float32

    # Built once per block.
    row = lax.broadcasted_iota(jnp.int32, (n, n), 0)
    col = lax.broadcasted_iota(jnp.int32, (n, n), 1)
    diag = row == col
    node_id = lax.broadcasted_iota(jnp.int32, (n, 1), 0)

    # --- Pass 1: normalized adjacency  Â = D^-1/2 (A + I_fix) D^-1/2, once per graph.
    #     fori_loop (not an unrolled Python loop) bounds live ranges -> fewer spills.
    def _normalize(g, carry):
        a = adj_ref[g].astype(f32)                            # bf16 stream -> f32 math
        a = jnp.where(diag, 1.0, a)                           # self loops: single select
        deg = jnp.maximum(jnp.sum(a, axis=1, keepdims=True), 1.0)
        dinv = lax.rsqrt(deg)                                 # [n, 1] f32
        # transpose-free row vector of dinv: diagonal select + sublane reduction
        dinv_row = jnp.sum(jnp.where(diag, dinv, 0.0), axis=0, keepdims=True)  # [1, n]
        adjn_ref[g] = ((a * dinv) * dinv_row).astype(adjn_ref.dtype)
        return carry

    lax.fori_loop(0, bt, _normalize, 0)

    # --- Pass 2: layer loop (static; activations stay resident in VMEM scratch).
    for l in range(num_layers):
        w_ref = wb[2 * l]
        p_in, p_out = w_ref.shape
        w = w_ref[...]                                        # mx dtype (bf16 or f32)
        b = wb[2 * l + 1][...].astype(f32)                    # [1, p_out] f32
        is_last = l == num_layers - 1

        # One tall matmul across all graphs in the block: fills the MXU M dim and
        # reuses the staged weights instead of bt small per-graph matmuls.
        if l == 0:
            src = x_ref[...].astype(w.dtype)                  # [bt*n, f0] natural width
        else:
            src = h_ref[:, :p_in]                             # already mx dtype
        xw_ref[:, :p_out] = jnp.dot(
            src, w, preferred_element_type=f32).astype(xw_ref.dtype)

        def _propagate(g, carry):
            r0 = pl.multiple_of(g * n, n)
            t = jnp.dot(adjn_ref[g], xw_ref[pl.ds(r0, n), :p_out],
                        preferred_element_type=f32)           # [n, p_out] f32
            m = (node_id < nvalid_ref[blk * bt + g]).astype(f32)
            out = (t + b) * m                                 # bias, then prefix node mask
            if apply_act:
                out = jnp.maximum(out, 0.0)
            if is_last:
                o_ref[g] = out.astype(o_ref.dtype)
            else:
                h_ref[pl.ds(r0, n), :p_out] = out.astype(h_ref.dtype)
            return carry

        lax.fori_loop(0, bt, _propagate, 0)


# --------------------------------- wrapper ----------------------------------

def fused_dense_gcn(x, adj, num_nodes, w_pads, b_pads, out_features, *,
                    apply_act=True, use_bf16=True, graphs_per_block=None):
    """Run the whole DenseGCNConv stack in a single pallas_call.

    x:   [B, N, Fin]   adj: [B, N, N]   num_nodes: [B] int32 (valid-prefix node counts)
    w_pads[0]: [round_up(Fin,8), p_1];  w_pads[l>0]: [p_l, p_{l+1}]  (outputs 128-padded)
    b_pads[l]: [1, p_{l+1}]
    Returns [B, N, out_features].
    """
    B, N, f_in = x.shape
    num_layers = len(w_pads)
    assert num_layers >= 1
    f0 = w_pads[0].shape[0]
    assert f0 >= f_in
    for l in range(1, num_layers):
        assert w_pads[l].shape[0] == w_pads[l - 1].shape[1]
    p_list = [f0] + [w.shape[1] for w in w_pads]
    p_last = p_list[-1]
    p_mid = max(p_list[1:])
    n_pad = _round_up(N, 16)             # 16: sublane-safe for packed-bf16 scratch slices
    mx = jnp.bfloat16 if use_bf16 else jnp.float32
    mxb = 2 if use_bf16 else 4
    out_dtype = x.dtype

    cap, cores = _tpu_vmem_capacity_and_cores()
    budget = int(cap * 0.70)

    per_graph = _per_graph_bytes(n_pad, f0, p_list, mxb, jnp.dtype(out_dtype).itemsize)
    fixed = _fixed_bytes(n_pad, p_list, mxb)
    if graphs_per_block is None:
        bt = _choose_graphs_per_block(B, per_graph, fixed, budget, cores)
    else:
        bt = max(1, min(int(graphs_per_block), B))

    steps = pl.cdiv(B, bt)
    b_pad = steps * bt                    # batch padded with masked dummy graphs

    # HBM streams: bf16 adjacency (exact for 0/1 adjacency; f32 in the exact path),
    # x at its natural 8-aligned feature width, padded nodes as isolated zero graphs.
    adj_p = jnp.pad(adj.astype(mx), ((0, b_pad - B), (0, n_pad - N), (0, n_pad - N)))
    x_p = jnp.pad(x.astype(jnp.float32),
                  ((0, b_pad - B), (0, n_pad - N), (0, f0 - f_in)))
    x_p = x_p.reshape(b_pad * n_pad, f0)
    nv = jnp.pad(num_nodes.astype(jnp.int32), (0, b_pad - B))

    # Always set vmem_limit explicitly (v5e's scoped default is only 16 MiB); keep
    # headroom below the physical capacity (matters on v7x's 64 MiB).
    need = fixed + bt * per_graph
    vmem_limit = int(min(max(int(need * 1.3) + (6 << 20), 32 << 20), int(cap * 0.82)))
    vmem_limit = max(vmem_limit, min(int(need * 1.15), int(cap * 0.90)))
    # TODO(synk): for very large N the [N,N] adjacency should be row-strip tiled
    # (inner pltpu.emit_pipeline) instead of growing vmem_limit_bytes.

    kernel = functools.partial(
        _fused_gcn_kernel, graphs_per_block=bt, num_layers=num_layers,
        apply_act=apply_act)

    in_specs = [
        pl.BlockSpec((bt * n_pad, f0), lambda i, nv: (i, 0)),        # x (natural width)
        pl.BlockSpec((bt, n_pad, n_pad), lambda i, nv: (i, 0, 0)),   # adjacency (mx dtype)
    ]
    operands = [x_p, adj_p]
    for w, b in zip(w_pads, b_pads):
        # TODO(synk): constant-index weight/bias blocks could be single-buffered
        # (pipeline_mode=pl.Buffered(1)) to shave VMEM on v7x.
        in_specs.append(pl.BlockSpec(w.shape, lambda i, nv: (0, 0)))
        in_specs.append(pl.BlockSpec(b.shape, lambda i, nv: (0, 0)))
        operands.append(w.astype(mx))
        operands.append(b.astype(jnp.float32))

    out = pl.pallas_call(
        kernel,
        out_shape=jax.ShapeDtypeStruct((b_pad, n_pad, p_last), out_dtype),
        grid_spec=pltpu.PrefetchScalarGridSpec(
            num_scalar_prefetch=1,
            grid=(steps,),
            in_specs=in_specs,
            out_specs=pl.BlockSpec((bt, n_pad, p_last), lambda i, nv: (i, 0, 0)),
            scratch_shapes=[
                pltpu.VMEM((bt, n_pad, n_pad), mx),      # normalized adjacency per graph
                pltpu.VMEM((bt * n_pad, p_mid), mx),     # X @ W (per layer, all graphs)
                pltpu.VMEM((bt * n_pad, p_mid), mx),     # inter-layer activations
            ],
        ),
        compiler_params=pltpu.CompilerParams(
            dimension_semantics=("parallel",),
            vmem_limit_bytes=vmem_limit,
        ),
    )(nv, *operands)

    # TODO(synk): consumers that can take the padded slab should skip this slice
    # (it is a separate O(B*N*p_last) HBM copy).
    return out[:B, :N, :out_features]


# --------------------------------- module -----------------------------------

class PoolBlockPallas:
    """JAX/Pallas equivalent of the GNN embedding path implied by PoolBlock.__init__."""

    def __init__(self, embedding_sizes, forced_embeddings=None,
                 use_bf16_matmul=True, seed=0):
        self.embedding_sizes = list(embedding_sizes)
        self.forced_embeddings = forced_embeddings
        self.use_bf16_matmul = use_bf16_matmul

        key = jax.random.PRNGKey(seed)
        self.weights, self.biases = [], []          # unpadded (reference / export)
        self._w_pad, self._b_pad = [], []           # kernel operands
        for i in range(len(self.embedding_sizes) - 1):
            fin, fout = self.embedding_sizes[i], self.embedding_sizes[i + 1]
            # Layer-0 input width stays narrow (8-aligned) so x streams unpadded;
            # all output widths are 128-padded so every store is a full-lane vst.
            pin = _round_up(fin, 8) if i == 0 else _round_up(fin, 128)
            pout = _round_up(fout, 128)
            key, kw, kb = jax.random.split(key, 3)
            scale = (6.0 / (fin + fout)) ** 0.5      # deterministic Glorot-style init
            w = jax.random.uniform(kw, (fin, fout), jnp.float32, -scale, scale)
            b = jax.random.uniform(kb, (1, fout), jnp.float32, -0.1, 0.1)
            self.weights.append(w)
            self.biases.append(b)
            self._w_pad.append(jnp.zeros((pin, pout), jnp.float32).at[:fin, :fout].set(w))
            self._b_pad.append(jnp.zeros((1, pout), jnp.float32).at[:, :fout].set(b))

    @property
    def input_dim(self):
        return self.embedding_sizes[0]

    @property
    def output_dim(self):
        return self.embedding_sizes[-1]

    @property
    def receptive_field(self):
        return len(self.embedding_sizes) - 1

    def forward(self, x, adj, mask=None):
        B, N, _ = x.shape
        if mask is None:
            mask2 = jnp.ones((B, N), jnp.float32)
        else:
            mask2 = mask.astype(jnp.float32).reshape(B, N)
        # Standard to_dense_batch layout: valid nodes form a prefix of each graph.
        # TODO(synk): arbitrary (non-prefix) node masks would need an explicit mask stream.
        num_nodes = jnp.sum(mask2, axis=1).astype(jnp.int32)

        old_embeddings = x
        if self.forced_embeddings is not None:
            new_x = (self.forced_embeddings
                     * jnp.ones((B, N, self.output_dim), x.dtype)
                     * mask2[..., None])
        elif len(self.weights) == 0:
            new_x = x
        else:
            new_x = fused_dense_gcn(
                x, adj, num_nodes, self._w_pad, self._b_pad, self.output_dim,
                apply_act=True, use_bf16=self.use_bf16_matmul)

        # TODO(synk): assignment matrix / new_adj / pool_loss / probabilities are defined
        # only by concrete subclasses (abstract forward) and are passed through here.
        return new_x, adj, None, None, jnp.float32(0.0), None, old_embeddings, mask2


# -------------------------------- reference ---------------------------------

def _reference_forward(weights, biases, x, adj, mask):
    """Pure-JAX reference of the same math for a sanity check."""
    B, N, _ = x.shape
    mask3 = mask.astype(jnp.float32).reshape(B, N, 1)
    eye = jnp.eye(N, dtype=jnp.float32)[None]
    out = x.astype(jnp.float32)
    for w, b in zip(weights, biases):
        a = adj.astype(jnp.float32) * (1.0 - eye) + eye
        deg = jnp.clip(jnp.sum(a, axis=-1, keepdims=True), 1.0, None)
        dinv = 1.0 / jnp.sqrt(deg)
        a_n = dinv * a * jnp.swapaxes(dinv, -1, -2)
        out = jnp.einsum("bnm,bmf->bnf", a_n, out @ w) + b
        out = jnp.maximum(out * mask3, 0.0)
    return out


if __name__ == "__main__":
    key = jax.random.PRNGKey(0)
    B, N = 2, 16
    embedding_sizes = [4, 32, 32]

    k1, k2 = jax.random.split(key, 2)
    x = jax.random.normal(k1, (B, N, embedding_sizes[0]), jnp.float32)
    adj_raw = (jax.random.uniform(k2, (B, N, N)) > 0.7).astype(jnp.float32)
    adj = jnp.maximum(adj_raw, jnp.swapaxes(adj_raw, -1, -2))      # symmetric 0/1 adjacency
    mask = jnp.ones((B, N), jnp.float32).at[1, 12:].set(0.0)        # graph 1 has 12 valid nodes

    # Exact-f32 kernel path vs pure-JAX reference (tight tolerance).
    block_f32 = PoolBlockPallas(embedding_sizes, use_bf16_matmul=False, seed=0)
    out_f32 = block_f32.forward(x, adj, mask)[0]
    out_f32 = jax.block_until_ready(out_f32)
    ref = _reference_forward(block_f32.weights, block_f32.biases, x, adj, mask)
    assert out_f32.shape == ref.shape
    err_f32 = float(jnp.max(jnp.abs(out_f32 - ref)))
    assert jnp.allclose(out_f32, ref, atol=2e-3, rtol=2e-3), err_f32

    # Default bf16-MXU path (f32 accumulation) vs the same reference (loose tolerance).
    block_bf16 = PoolBlockPallas(embedding_sizes, use_bf16_matmul=True, seed=0)
    out_bf16 = jax.block_until_ready(block_bf16.forward(x, adj, mask)[0])
    err_bf16 = float(jnp.max(jnp.abs(out_bf16 - ref)))
    assert jnp.allclose(out_bf16, ref, atol=6e-2, rtol=6e-2), err_bf16

    print("KERNEL_OK")
</pallas_src>

<mosaic_0001>
module attributes {stable_mosaic.version = 11 : i64} {
  func.func @_fused_gcn_kernel(%arg0: i32, %arg1: memref<2xi32, #tpu.memory_space<smem>>, %arg2: memref<32x8xf32, #tpu.memory_space<vmem>>, %arg3: memref<2x16x16xf32, #tpu.memory_space<vmem>>, %arg4: memref<8x128xf32, #tpu.memory_space<vmem>>, %arg5: memref<1x128xf32, #tpu.memory_space<vmem>>, %arg6: memref<128x128xf32, #tpu.memory_space<vmem>>, %arg7: memref<1x128xf32, #tpu.memory_space<vmem>>, %arg8: memref<2x16x128xf32, #tpu.memory_space<vmem>>, %arg9: memref<2x16x16xf32, #tpu.memory_space<vmem>>, %arg10: memref<32x128xf32, #tpu.memory_space<vmem>>, %arg11: memref<32x128xf32, #tpu.memory_space<vmem>>) attributes {dimension_semantics = [#tpu.dimension_semantics<parallel>], iteration_bounds = array<i64: 1>, scalar_prefetch = 1 : i64, scratch_operands = 3 : i64, tpu.core_type = #tpu.core_type<tc>, window_params = [{transform_indices = @transform_0, window_bounds = array<i64: 32, 8>}, {transform_indices = @transform_1, window_bounds = array<i64: 2, 16, 16>}, {pipeline_mode = #tpu.pipeline_mode<synchronous>, transform_indices = @transform_2, window_bounds = array<i64: 8, 128>}, {pipeline_mode = #tpu.pipeline_mode<synchronous>, transform_indices = @transform_3, window_bounds = array<i64: 1, 128>}, {pipeline_mode = #tpu.pipeline_mode<synchronous>, transform_indices = @transform_4, window_bounds = array<i64: 128, 128>}, {pipeline_mode = #tpu.pipeline_mode<synchronous>, transform_indices = @transform_5, window_bounds = array<i64: 1, 128>}, {transform_indices = @transform_6, window_bounds = array<i64: 2, 16, 128>}]} {
    %0 = tpu.iota {dimensions = array<i32: 0>} : vector<16x16xi32>
    %1 = tpu.iota {dimensions = array<i32: 1>} : vector<16x16xi32>
    %2 = arith.cmpi eq, %0, %1 : vector<16x16xi32>
    %3 = tpu.iota {dimensions = array<i32: 0>} : vector<16x1xi32>
    %c0_i32 = arith.constant 0 : i32
    %c2_i32 = arith.constant 2 : i32
    %4 = arith.addi %c0_i32, %c2_i32 : i32
    %c1_i32 = arith.constant 1 : i32
    scf.for %arg12 = %c0_i32 to %4 step %c1_i32  : i32 {
      %17 = arith.index_cast %arg12 : i32 to index
      %c0_25 = arith.constant 0 : index
      %c0_26 = arith.constant 0 : index
      %18 = vector.load %arg3[%17, %c0_25, %c0_26] : memref<2x16x16xf32, #tpu.memory_space<vmem>>, vector<1x16x16xf32>
      %19 = vector.shape_cast %18 : vector<1x16x16xf32> to vector<16x16xf32>
      %cst_27 = arith.constant 1.000000e+00 : f32
      %20 = vector.broadcast %cst_27 : f32 to vector<16x16xf32>
      %21 = arith.select %2, %20, %19 : vector<16x16xi1>, vector<16x16xf32>
      %cst_28 = arith.constant dense<0.000000e+00> : vector<16xf32>
      %22 = vector.multi_reduction <add>, %21, %cst_28 [1] : vector<16x16xf32> to vector<16xf32>
      %23 = vector.shape_cast %22 : vector<16xf32> to vector<16x1xf32>
      %cst_29 = arith.constant 1.000000e+00 : f32
      %24 = vector.broadcast %cst_29 : f32 to vector<16x1xf32>
      %25 = arith.maximumf %23, %24 : vector<16x1xf32>
      %26 = math.rsqrt %25 : vector<16x1xf32>
      %cst_30 = arith.constant 0.000000e+00 : f32
      %27 = vector.shape_cast %26 : vector<16x1xf32> to vector<16x1xf32>
      %28 = vector.broadcast %27 : vector<16x1xf32> to vector<16x16xf32>
      %29 = vector.broadcast %cst_30 : f32 to vector<16x16xf32>
      %30 = arith.select %2, %28, %29 : vector<16x16xi1>, vector<16x16xf32>
      %cst_31 = arith.constant dense<0.000000e+00> : vector<16xf32>
      %31 = vector.multi_reduction <add>, %30, %cst_31 [0] : vector<16x16xf32> to vector<16xf32>
      %32 = vector.shape_cast %31 : vector<16xf32> to vector<1x16xf32>
      %33 = vector.broadcast %26 : vector<16x1xf32> to vector<16x16xf32>
      %34 = arith.mulf %21, %33 : vector<16x16xf32>
      %35 = vector.broadcast %32 : vector<1x16xf32> to vector<16x16xf32>
      %36 = arith.mulf %34, %35 : vector<16x16xf32>
      %37 = arith.index_cast %arg12 : i32 to index
      %c0_32 = arith.constant 0 : index
      %c0_33 = arith.constant 0 : index
      %38 = vector.load %arg9[%37, %c0_32, %c0_33] : memref<2x16x16xf32, #tpu.memory_space<vmem>>, vector<1x16x16xf32>
      %39 = vector.shape_cast %38 : vector<1x16x16xf32> to vector<16x16xf32>
      %40 = vector.shape_cast %36 : vector<16x16xf32> to vector<1x16x16xf32>
      tpu.vector_store %arg9[%37, %c0_32, %c0_33], %40 {strides = array<i32>} : memref<2x16x16xf32, #tpu.memory_space<vmem>>, vector<1x16x16xf32>,
    }
    %c2_i32_0 = arith.constant 2 : i32
    %c0 = arith.constant 0 : index
    %c0_1 = arith.constant 0 : index
    %5 = vector.load %arg4[%c0, %c0_1] : memref<8x128xf32, #tpu.memory_space<vmem>>, vector<8x128xf32>
    %c0_2 = arith.constant 0 : index
    %c0_3 = arith.constant 0 : index
    %6 = vector.load %arg5[%c0_2, %c0_3] : memref<1x128xf32, #tpu.memory_space<vmem>>, vector<1x128xf32>
    %c0_4 = arith.constant 0 : index
    %c0_5 = arith.constant 0 : index
    %7 = vector.load %arg2[%c0_4, %c0_5] : memref<32x8xf32, #tpu.memory_space<vmem>>, vector<32x8xf32>
    %cst = arith.constant dense<0.000000e+00> : vector<32x128xf32>
    %8 = tpu.matmul %7, %5, %cst {dimension_numbers = #tpu.dot_dimension_numbers<[1], [0], [0], [1], [0, 0, 1, 1], [], []>} : vector<32x8xf32>, vector<8x128xf32>, vector<32x128xf32> -> vector<32x128xf32>
    %c0_6 = arith.constant 0 : index
    %c0_7 = arith.constant 0 : index
    %9 = vector.load %arg10[%c0_6, %c0_7] : memref<32x128xf32, #tpu.memory_space<vmem>>, vector<32x128xf32>
    tpu.vector_store %arg10[%c0_6, %c0_7], %8 {strides = array<i32>} : memref<32x128xf32, #tpu.memory_space<vmem>>, vector<32x128xf32>,
    %c0_i32_8 = arith.constant 0 : i32
    %c2_i32_9 = arith.constant 2 : i32
    %10 = arith.addi %c0_i32_8, %c2_i32_9 : i32
    %c1_i32_10 = arith.constant 1 : i32
    scf.for %arg12 = %c0_i32_8 to %10 step %c1_i32_10  : i32 {
      %c16_i32 = arith.constant 16 : i32
      %17 = arith.muli %arg12, %c16_i32 : i32
      %18 = tpu.assume_multiple %17, 16 : i32
      %19 = arith.index_cast %arg12 : i32 to index
      %c0_25 = arith.constant 0 : index
      %c0_26 = arith.constant 0 : index
      %20 = vector.load %arg9[%19, %c0_25, %c0_26] : memref<2x16x16xf32, #tpu.memory_space<vmem>>, vector<1x16x16xf32>
      %21 = vector.shape_cast %20 : vector<1x16x16xf32> to vector<16x16xf32>
      %22 = arith.index_cast %18 : i32 to index
      %c0_27 = arith.constant 0 : index
      %23 = vector.load %arg10[%22, %c0_27] : memref<32x128xf32, #tpu.memory_space<vmem>>, vector<16x128xf32>
      %cst_28 = arith.constant dense<0.000000e+00> : vector<16x128xf32>
      %24 = tpu.matmul %21, %23, %cst_28 {dimension_numbers = #tpu.dot_dimension_numbers<[1], [0], [0], [1], [0, 0, 1, 1], [], []>} : vector<16x16xf32>, vector<16x128xf32>, vector<16x128xf32> -> vector<16x128xf32>
      %c2_i32_29 = arith.constant 2 : i32
      %25 = arith.muli %arg0, %c2_i32_29 : i32
      %26 = arith.addi %25, %arg12 : i32
      %27 = arith.index_cast %26 : i32 to index
      %28 = memref.load %arg1[%27] : memref<2xi32, #tpu.memory_space<smem>>
      %29 = vector.broadcast %28 : i32 to vector<16x1xi32>
      %30 = arith.cmpi slt, %3, %29 : vector<16x1xi32>
      %31 = arith.extui %30 : vector<16x1xi1> to vector<16x1xi32>
      %32 = arith.sitofp %31 : vector<16x1xi32> to vector<16x1xf32>
      %33 = vector.broadcast %6 : vector<1x128xf32> to vector<16x128xf32>
      %34 = arith.addf %24, %33 : vector<16x128xf32>
      %35 = vector.broadcast %32 : vector<16x1xf32> to vector<16x128xf32>
      %36 = arith.mulf %34, %35 : vector<16x128xf32>
      %cst_30 = arith.constant 0.000000e+00 : f32
      %37 = vector.broadcast %cst_30 : f32 to vector<16x128xf32>
      %38 = arith.maximumf %36, %37 : vector<16x128xf32>
      %39 = arith.index_cast %18 : i32 to index
      %c0_31 = arith.constant 0 : index
      %40 = vector.load %arg11[%39, %c0_31] : memref<32x128xf32, #tpu.memory_space<vmem>>, vector<16x128xf32>
      tpu.vector_store %arg11[%39, %c0_31], %38 {strides = array<i32>} : memref<32x128xf32, #tpu.memory_space<vmem>>, vector<16x128xf32>,
    }
    %c2_i32_11 = arith.constant 2 : i32
    %c0_12 = arith.constant 0 : index
    %c0_13 = arith.constant 0 : index
    %11 = vector.load %arg6[%c0_12, %c0_13] : memref<128x128xf32, #tpu.memory_space<vmem>>, vector<128x128xf32>
    %c0_14 = arith.constant 0 : index
    %c0_15 = arith.constant 0 : index
    %12 = vector.load %arg7[%c0_14, %c0_15] : memref<1x128xf32, #tpu.memory_space<vmem>>, vector<1x128xf32>
    %c0_16 = arith.constant 0 : index
    %c0_17 = arith.constant 0 : index
    %13 = vector.load %arg11[%c0_16, %c0_17] : memref<32x128xf32, #tpu.memory_space<vmem>>, vector<32x128xf32>
    %cst_18 = arith.constant dense<0.000000e+00> : vector<32x128xf32>
    %14 = tpu.matmul %13, %11, %cst_18 {dimension_numbers = #tpu.dot_dimension_numbers<[1], [0], [0], [1], [0, 0, 1, 1], [], []>} : vector<32x128xf32>, vector<128x128xf32>, vector<32x128xf32> -> vector<32x128xf32>
    %c0_19 = arith.constant 0 : index
    %c0_20 = arith.constant 0 : index
    %15 = vector.load %arg10[%c0_19, %c0_20] : memref<32x128xf32, #tpu.memory_space<vmem>>, vector<32x128xf32>
    tpu.vector_store %arg10[%c0_19, %c0_20], %14 {strides = array<i32>} : memref<32x128xf32, #tpu.memory_space<vmem>>, vector<32x128xf32>,
    %c0_i32_21 = arith.constant 0 : i32
    %c2_i32_22 = arith.constant 2 : i32
    %16 = arith.addi %c0_i32_21, %c2_i32_22 : i32
    %c1_i32_23 = arith.constant 1 : i32
    scf.for %arg12 = %c0_i32_21 to %16 step %c1_i32_23  : i32 {
      %c16_i32 = arith.constant 16 : i32
      %17 = arith.muli %arg12, %c16_i32 : i32
      %18 = tpu.assume_multiple %17, 16 : i32
      %19 = arith.index_cast %arg12 : i32 to index
      %c0_25 = arith.constant 0 : index
      %c0_26 = arith.constant 0 : index
      %20 = vector.load %arg9[%19, %c0_25, %c0_26] : memref<2x16x16xf32, #tpu.memory_space<vmem>>, vector<1x16x16xf32>
      %21 = vector.shape_cast %20 : vector<1x16x16xf32> to vector<16x16xf32>
      %22 = arith.index_cast %18 : i32 to index
      %c0_27 = arith.constant 0 : index
      %23 = vector.load %arg10[%22, %c0_27] : memref<32x128xf32, #tpu.memory_space<vmem>>, vector<16x128xf32>
      %cst_28 = arith.constant dense<0.000000e+00> : vector<16x128xf32>
      %24 = tpu.matmul %21, %23, %cst_28 {dimension_numbers = #tpu.dot_dimension_numbers<[1], [0], [0], [1], [0, 0, 1, 1], [], []>} : vector<16x16xf32>, vector<16x128xf32>, vector<16x128xf32> -> vector<16x128xf32>
      %c2_i32_29 = arith.constant 2 : i32
      %25 = arith.muli %arg0, %c2_i32_29 : i32
      %26 = arith.addi %25, %arg12 : i32
      %27 = arith.index_cast %26 : i32 to index
      %28 = memref.load %arg1[%27] : memref<2xi32, #tpu.memory_space<smem>>
      %29 = vector.broadcast %28 : i32 to vector<16x1xi32>
      %30 = arith.cmpi slt, %3, %29 : vector<16x1xi32>
      %31 = arith.extui %30 : vector<16x1xi1> to vector<16x1xi32>
      %32 = arith.sitofp %31 : vector<16x1xi32> to vector<16x1xf32>
      %33 = vector.broadcast %12 : vector<1x128xf32> to vector<16x128xf32>
      %34 = arith.addf %24, %33 : vector<16x128xf32>
      %35 = vector.broadcast %32 : vector<16x1xf32> to vector<16x128xf32>
      %36 = arith.mulf %34, %35 : vector<16x128xf32>
      %cst_30 = arith.constant 0.000000e+00 : f32
      %37 = vector.broadcast %cst_30 : f32 to vector<16x128xf32>
      %38 = arith.maximumf %36, %37 : vector<16x128xf32>
      %39 = arith.index_cast %arg12 : i32 to index
      %c0_31 = arith.constant 0 : index
      %c0_32 = arith.constant 0 : index
      %40 = vector.load %arg8[%39, %c0_31, %c0_32] : memref<2x16x128xf32, #tpu.memory_space<vmem>>, vector<1x16x128xf32>
      %41 = vector.shape_cast %40 : vector<1x16x128xf32> to vector<16x128xf32>
      %42 = vector.shape_cast %38 : vector<16x128xf32> to vector<1x16x128xf32>
      tpu.vector_store %arg8[%39, %c0_31, %c0_32], %42 {strides = array<i32>} : memref<2x16x128xf32, #tpu.memory_space<vmem>>, vector<1x16x128xf32>,
    }
    %c2_i32_24 = arith.constant 2 : i32
    return
  }
  func.func @transform_0(%arg0: i32, %arg1: memref<2xi32, #tpu.memory_space<smem>>) -> (i32, i32) {
    %c0_i32 = arith.constant 0 : i32
    %c0_i32_0 = arith.constant 0 : i32
    return %arg0, %c0_i32 : i32, i32
  }
  func.func @transform_1(%arg0: i32, %arg1: memref<2xi32, #tpu.memory_space<smem>>) -> (i32, i32, i32) {
    %c0_i32 = arith.constant 0 : i32
    %c0_i32_0 = arith.constant 0 : i32
    %c0_i32_1 = arith.constant 0 : i32
    return %arg0, %c0_i32, %c0_i32_0 : i32, i32, i32
  }
  func.func @transform_2(%arg0: i32, %arg1: memref<2xi32, #tpu.memory_space<smem>>) -> (i32, i32) {
    %c0_i32 = arith.constant 0 : i32
    %c0_i32_0 = arith.constant 0 : i32
    %c0_i32_1 = arith.constant 0 : i32
    return %c0_i32, %c0_i32_0 : i32, i32
  }
  func.func @transform_3(%arg0: i32, %arg1: memref<2xi32, #tpu.memory_space<smem>>) -> (i32, i32) {
    %c0_i32 = arith.constant 0 : i32
    %c0_i32_0 = arith.constant 0 : i32
    %c0_i32_1 = arith.constant 0 : i32
    return %c0_i32, %c0_i32_0 : i32, i32
  }
  func.func @transform_4(%arg0: i32, %arg1: memref<2xi32, #tpu.memory_space<smem>>) -> (i32, i32) {
    %c0_i32 = arith.constant 0 : i32
    %c0_i32_0 = arith.constant 0 : i32
    %c0_i32_1 = arith.constant 0 : i32
    return %c0_i32, %c0_i32_0 : i32, i32
  }
  func.func @transform_5(%arg0: i32, %arg1: memref<2xi32, #tpu.memory_space<smem>>) -> (i32, i32) {
    %c0_i32 = arith.constant 0 : i32
    %c0_i32_0 = arith.constant 0 : i32
    %c0_i32_1 = arith.constant 0 : i32
    return %c0_i32, %c0_i32_0 : i32, i32
  }
  func.func @transform_6(%arg0: i32, %arg1: memref<2xi32, #tpu.memory_space<smem>>) -> (i32, i32, i32) {
    %c0_i32 = arith.constant 0 : i32
    %c0_i32_0 = arith.constant 0 : i32
    %c0_i32_1 = arith.constant 0 : i32
    return %arg0, %c0_i32, %c0_i32_0 : i32, i32, i32
  }
}

</mosaic_0001>

<llo_original>
// kernel: tpu_custom_call.1
$region0: #{tpu_custom_call.1}
  #allocation0 [shape = 'u32[]', space=smem, size = 0x4, offset = 0x4, fixed_abs, tag = 'smem constant byte address 0x4 - core index']
  #allocation1 [shape = 'u32[72,128]{1,0:T(1,128)}', space=vmem, size = 0x9000, scoped, tag = 'internal scratch']
  #allocation2 [shape = 'f32[2,16,16]{2,1,0:T(8,128)}', space=vmem, size = 0x4000, scoped, tag = 'scratch operand']
  #allocation3 [shape = 'f32[32,128]{1,0:T(8,128)}', space=vmem, size = 0x4000, scoped, tag = 'scratch operand']
  #allocation4 [shape = 'f32[32,128]{1,0:T(8,128)}', space=vmem, size = 0x4000, scoped, tag = 'scratch operand']
  #allocation5 [shape = 's32[1]{0}', space=sflag, size = 0x4, scoped, tag = 'scoped memory for tpu_custom_call.1']
  #allocation6 [shape = 'u8[512]{0}', space=smem, size = 0x200, scoped, tag = 'prefetched SMEM operand 0']
  %s0 = inlined_call_operand.vmem [shape: s32[2], index: 0, kind: input, shape index: {}]
  %s1 = inlined_call_operand.vmem [shape: f32[32,8], index: 1, kind: input, shape index: {}]
  %s2 = inlined_call_operand.vmem [shape: f32[2,16,16], index: 2, kind: input, shape index: {}]
  %s3 = inlined_call_operand.vmem [shape: f32[8,128], index: 3, kind: input, shape index: {}]
  %s4 = inlined_call_operand.vmem [shape: f32[1,128], index: 4, kind: input, shape index: {}]
  %s5 = inlined_call_operand.hbm [shape: f32[128,128], index: 5, kind: input, shape index: {}]
  %s6 = inlined_call_operand.vmem [shape: f32[1,128], index: 6, kind: input, shape index: {}]
  %s7 = inlined_call_operand.hbm [shape: f32[2,16,128], index: 7, kind: output, shape index: {}]
  %s8 = sld [smem:[#allocation0]]
  $region59: #{tpu_custom_call.1} parent=0
    _
  %s10 = ssub.s32 1, %s8
  %s11 = scalar_select 0, %s10, %s8
  %s13 = sshll.u32 %s0, 4
  %s14 = int_to_ptr.vmem [resolvable:$true] %s13
  %16 = dma.vmem_to_smem %s14, 16, [#allocation6], [#allocation5]
  %18 = dma.done [#allocation5], 16
  %19 = sfence
  $region1: #{tpu_custom_call.1} parent=0
    #allocation7 [shape = 'u8[65536]{0}', space=vmem, size = 0x10000, scoped, tag = 'input window, operand 5, single buffered']
    #allocation8 [shape = 's32[1]{0}', space=sflag, size = 0x4, scoped, tag = 'scoped memory for tpu_custom_call.1']
    #allocation9 [shape = 's32[1]{0}', space=sflag, size = 0x4, scoped, tag = 'scoped memory for tpu_custom_call.1']
    #allocation10 [shape = 'u8[16384]{0}', space=vmem, size = 0x4000, scoped, tag = 'output window, operand 0, single buffered']
    %20 = vsyncpa [#allocation8], 0
    %21 = vsyncpa [#allocation9], 0
    // Predicated region
    $region2: #{tpu_custom_call.1} parent=1 // pred_check
      _
    $region3: #{tpu_custom_call.1} parent=1 // pred_check_branch
      %23 = sbr.rel (0) target = $region5
    $region4: #{tpu_custom_call.1} parent=1 // pred_region
      _
    $region5: #{tpu_custom_call.1} parent=1 // pred_fallthru
      _
    // Predicated region
    $region6: #{tpu_custom_call.1} parent=1 // pred_check
      _
    $region7: #{tpu_custom_call.1} parent=1 // pred_check_branch
      %25 = sbr.rel (0) target = $region9
    $region8: #{tpu_custom_call.1} parent=1 // pred_region
      _
    $region9: #{tpu_custom_call.1} parent=1 // pred_fallthru
      _
    // Predicated region
    $region10: #{tpu_custom_call.1} parent=1 // pred_check
      _
    $region11: #{tpu_custom_call.1} parent=1 // pred_check_branch
      %27 = sbr.rel (0) target = $region13
    $region12: #{tpu_custom_call.1} parent=1 // pred_region
      _
    $region13: #{tpu_custom_call.1} parent=1 // pred_fallthru
      _
    // Predicated region
    $region14: #{tpu_custom_call.1} parent=1 // pred_check
      _
    $region15: #{tpu_custom_call.1} parent=1 // pred_check_branch
      %29 = sbr.rel (0) target = $region17
    $region16: #{tpu_custom_call.1} parent=1 // pred_region
      _
    $region17: #{tpu_custom_call.1} parent=1 // pred_fallthru
      _
    // Predicated region
    $region18: #{tpu_custom_call.1} parent=1 // pred_check
      _
    $region19: #{tpu_custom_call.1} parent=1 // pred_check_branch
      %31 = sbr.rel (0) target = $region21
    $region20: #{tpu_custom_call.1} parent=1 // pred_region
      %33 = vsyncadd [#allocation8], 0
      %s34 = sshll.u32 %s5, 4
      %s35 = int_to_ptr.hbm [resolvable:$true] %s34
      %s36 = sshll.u32 [#allocation7], 4
      %s37 = int_to_ptr.vmem [resolvable:$true] %s36
      %42 = dma.hbm_to_vmem [thread:$0]  %s35, 2048, %s37, [#allocation8], 128, 128, 8
    $region21: #{tpu_custom_call.1} parent=1 // pred_fallthru
      _
    // Predicated region
    $region22: #{tpu_custom_call.1} parent=1 // pred_check
      _
    $region23: #{tpu_custom_call.1} parent=1 // pred_check_branch
      %44 = sbr.rel (0) target = $region25
    $region24: #{tpu_custom_call.1} parent=1 // pred_region
      _
    $region25: #{tpu_custom_call.1} parent=1 // pred_fallthru
      _
    // Predicated region
    $region26: #{tpu_custom_call.1} parent=1 // pred_check
      _
    $region27: #{tpu_custom_call.1} parent=1 // pred_check_branch
      %46 = sbr.rel (0) target = $region29
    $region28: #{tpu_custom_call.1} parent=1 // pred_region
      %48 = dma.done [#allocation8], 2048
    $region29: #{tpu_custom_call.1} parent=1 // pred_fallthru
      _
    %v49 = vlaneseq
    %v50 = vshrl.u32 %v49, 7
    %v51 = vadd.s32 %v50, 8
    %v52 = vlaneseq
    %v53 = vand.u32 %v52, 127
    %vm54 = vcmp.eq.s32.totalorder %v50, %v53
    %vm55 = vcmp.eq.s32.totalorder %v51, %v53
    loop: start=0, step=1, limit=2
    $region30: #{tpu_custom_call.1} parent=1 // loop_pre_header
      _
    $region31: #{tpu_custom_call.1} parent=1 // loop_header
      %s57 = sphi 0, %s61
      %p58 = scmp.ge.s32.totalorder %s57, 2
    $region32: #{tpu_custom_call.1} parent=1 // loop_header_branch
      %60 = sbr.rel (%p58) target = $region36
    $region33: #{tpu_custom_call.1} parent=1 // loop_body
      %s62 = smul.u32 %s57, 16
      %s63 = scalar_lea.vmem %s2, %s62
      %v64 = vld [vmem:[%s63] sm:$0xff]
      %v65 = vld [vmem:[%s63 + $0x8] sm:$0xff]
      %v66 = vsel %vm54, 1.0, %v64
      %v67 = vsel %vm55, 1.0, %v65
      %vm68 = vcmask 130048
      %v69 = vsel %vm68, %v66, 0.0
      %70 = vadd.xlane.f32.xlu0 %v69
      %v71 = vpop.xlane.xlu0 %70
      %v72 = vsel %vm68, %v67, 0.0
      %73 = vadd.xlane.f32.xlu0 %v72
      %v74 = vpop.xlane.xlu0 %73
      %v75 = vmax.f32 %v71, 1.0
      %v76 = vmax.f32 %v74, 1.0
      %v77 = vrsqrt.pop %v75
      %v78 = vmul.f32 %v77, %v75
      %v79 = vmul.f32 %v78, %v77
      %v80 = vmul.f32 0.5, %v79
      %v81 = vsub.f32 1.5, %v80
      %v82 = vmul.f32 %v77, %v81
      %vm83 = vweird.f32 %v75
      %vm84 = vweird.f32 %v77
      %vm85 = vmor %vm83, %vm84
      %v86 = vsel %vm85, %v77, %v82
      %v87 = vrsqrt.pop %v76
      %v88 = vmul.f32 %v87, %v76
      %v89 = vmul.f32 %v88, %v87
      %v90 = vmul.f32 0.5, %v89
      %v91 = vsub.f32 1.5, %v90
      %v92 = vmul.f32 %v87, %v91
      %vm93 = vweird.f32 %v76
      %vm94 = vweird.f32 %v87
      %vm95 = vmor %vm93, %vm94
      %v96 = vsel %vm95, %v87, %v92
      %v97 = vsel %vm54, %v86, 0.0
      %v98 = vsel %vm55, %v96, 0.0
      %v99 = vsel %vm68, %v97, 0.0
      %v100 = vsel %vm68, %v98, 0.0
      %v101 = vadd.f32 %v99, %v100
      %v102 = vrot.slane %v101, 4
      %v103 = vadd.f32 %v101, %v102
      %v104 = vrot.slane %v103, 2
      %v105 = vadd.f32 %v103, %v104
      %v106 = vrot.slane %v105, 1
      %v107 = vadd.f32 %v105, %v106
      %v108 = vmul.f32 %v66, %v86
      %v109 = vmul.f32 %v67, %v96
      %v110 = vmul.f32 %v108, %v107
      %v111 = vmul.f32 %v109, %v107
      %s112 = scalar_lea.vmem [#allocation2], %s62
      %113 = vst.msk [vmem:[%s112] sm:$0xff] %vm68, %v110
      %114 = vst.msk [vmem:[%s112 + $0x8] sm:$0xff] %vm68, %v111
    $region34: #{tpu_custom_call.1} parent=1 // loop_footer
      %s61 = sadd.s32 1, %s57
    $region35: #{tpu_custom_call.1} parent=1 // loop_footer_branch
      %56 = sbr.rel target = $region31
    $region36: #{tpu_custom_call.1} parent=1 // loop_exit
      _
    %v115 = vld [vmem:[%s3] sm:$0xff]
    %v116 = vld [vmem:[%s4] sm:$0x1]
    %v117 = vld [vmem:[%s1] sm:$0xff]
    %v118 = vld [vmem:[%s1 + $0x8] sm:$0xff]
    %v119 = vld [vmem:[%s1 + $0x10] sm:$0xff]
    %v120 = vld [vmem:[%s1 + $0x18] sm:$0xff]
    %vm121 = vcmask 64512
    %v123 = vsel %vm121, %v117, 0
    %v126 = vsel %vm121, %v118, 0
    %v129 = vsel %vm121, %v119, 0
    %v132 = vsel %vm121, %v120, 0
    %134 = vmatpush.msra.mxu0 0.0
    %135 = vmatpush.msra.mxu0 0.0
    %136 = vmatpush.msra.mxu0 0.0
    %137 = vmatpush.msra.mxu0 0.0
    %138 = vmatpush.msra.mxu0 0.0
    %139 = vmatpush.msra.mxu0 0.0
    %140 = vmatpush.msra.mxu0 0.0
    %141 = vmatpush.msra.mxu0 0.0
    %142 = vmatpush.msra.mxu0 0.0
    %143 = vmatpush.msra.mxu0 0.0
    %144 = vmatpush.msra.mxu0 0.0
    %145 = vmatpush.msra.mxu0 0.0
    %146 = vmatpush.msra.mxu0 0.0
    %147 = vmatpush.msra.mxu0 0.0
    %148 = vmatpush.msra.mxu0 0.0
    %149 = vmatpush.msra.mxu0 %v115
    %150 = vmatmul.f32.gmra.mxu0 %v123
    %v151 = vpop.f32.mrf.mxu0
    %v152 = vadd.f32 0.0, %v151
    %153 = vmatmul.f32.gmra.mxu0 %v126
    %v154 = vpop.f32.mrf.mxu0
    %v155 = vadd.f32 0.0, %v154
    %156 = vmatmul.f32.gmra.mxu0 %v129
    %v157 = vpop.f32.mrf.mxu0
    %v158 = vadd.f32 0.0, %v157
    %159 = vmatmul.f32.gmra.mxu0 %v132
    %v160 = vpop.f32.mrf.mxu0
    %v161 = vadd.f32 0.0, %v160
    %162 = vdwg.mxu0
    %163 = vst [vmem:[#allocation3] sm:$0xff] %v152
    %164 = vst [vmem:[#allocation3 + $0x8] sm:$0xff] %v155
    %165 = vst [vmem:[#allocation3 + $0x10] sm:$0xff] %v158
    %166 = vst [vmem:[#allocation3 + $0x18] sm:$0xff] %v161
    loop: start=0, step=1, limit=2
    $region37: #{tpu_custom_call.1} parent=1 // loop_pre_header
      _
    $region38: #{tpu_custom_call.1} parent=1 // loop_header
      %s168 = sphi 0, %s172
      %p169 = scmp.ge.s32.totalorder %s168, 2
    $region39: #{tpu_custom_call.1} parent=1 // loop_header_branch
      %171 = sbr.rel (%p169) target = $region43
    $region40: #{tpu_custom_call.1} parent=1 // loop_body
      %s173 = smul.u32 %s168, 16
      %s174 = scalar_lea.vmem [#allocation2], %s173
      %v175 = vld [vmem:[%s174] sm:$0xff]
      %v176 = vld [vmem:[%s174 + $0x8] sm:$0xff]
      %s177 = scalar_lea.vmem [#allocation3], %s173
      %v178 = vld [vmem:[%s177] sm:$0xff]
      %v179 = vld [vmem:[%s177 + $0x8] sm:$0xff]
      %s180 = smul.u32 0, 2
      %s181 = sadd.s32 %s180, %s168
      %s182 = sld [smem:[#allocation6 + %s181]]
      %v183 = vstv %s182
      %vm184 = vcmp.lt.s32.totalorder %v50, %v183
      %vm185 = vcmp.lt.s32.totalorder %v51, %v183
      %v186 = vsel %vm184, 1, 0
      %v187 = vsel %vm185, 1, 0
      %v188 = vcvt.s32.f32 %v186
      %v189 = vcvt.s32.f32 %v187
      %v191 = vperm.slane %v116, 0
      %vm193 = vcmask 130048
      %v195 = vsel %vm193, %v175, 0
      %v198 = vsel %vm193, %v176, 0
      %200 = vmatpush.msra.mxu0 0.0
      %201 = vmatpush.msra.mxu0 0.0
      %202 = vmatpush.msra.mxu0 0.0
      %203 = vmatpush.msra.mxu0 0.0
      %204 = vmatpush.msra.mxu0 0.0
      %205 = vmatpush.msra.mxu0 0.0
      %206 = vmatpush.msra.mxu0 0.0
      %207 = vmatpush.msra.mxu0 0.0
      %208 = vmatpush.msra.mxu0 0.0
      %209 = vmatpush.msra.mxu0 0.0
      %210 = vmatpush.msra.mxu0 0.0
      %211 = vmatpush.msra.mxu0 0.0
      %212 = vmatpush.msra.mxu0 0.0
      %213 = vmatpush.msra.mxu0 0.0
      %214 = vmatpush.msra.mxu0 %v179
      %215 = vmatpush.msra.mxu0 %v178
      %216 = vmatmul.f32.gmra.mxu0 %v195
      %v217 = vpop.f32.mrf.mxu0
      %v218 = vadd.f32 %v191, %v217
      %219 = vmatmul.f32.gmra.mxu0 %v198
      %v220 = vpop.f32.mrf.mxu0
      %v221 = vadd.f32 %v191, %v220
      %222 = vdwg.mxu0
      %v223 = vmul.f32 %v218, %v188
      %v224 = vmul.f32 %v221, %v189
      %v225 = vmax.f32 %v223, 0.0
      %v226 = vmax.f32 %v224, 0.0
      %s227 = scalar_lea.vmem [#allocation4], %s173
      %228 = vst [vmem:[%s227] sm:$0xff] %v225
      %229 = vst [vmem:[%s227 + $0x8] sm:$0xff] %v226
    $region41: #{tpu_custom_call.1} parent=1 // loop_footer
      %s172 = sadd.s32 1, %s168
    $region42: #{tpu_custom_call.1} parent=1 // loop_footer_branch
      %167 = sbr.rel target = $region38
    $region43: #{tpu_custom_call.1} parent=1 // loop_exit
      _
    %v230 = vld [vmem:[#allocation7] sm:$0xff]
    %v231 = vld [vmem:[#allocation7 + $0x8] sm:$0xff]
    %v232 = vld [vmem:[#allocation7 + $0x10] sm:$0xff]
    %v233 = vld [vmem:[#allocation7 + $0x18] sm:$0xff]
    %v234 = vld [vmem:[#allocation7 + $0x20] sm:$0xff]
    %v235 = vld [vmem:[#allocation7 + $0x28] sm:$0xff]
    %v236 = vld [vmem:[#allocation7 + $0x30] sm:$0xff]
    %v237 = vld [vmem:[#allocation7 + $0x38] sm:$0xff]
    %v238 = vld [vmem:[#allocation7 + $0x40] sm:$0xff]
    %v239 = vld [vmem:[#allocation7 + $0x48] sm:$0xff]
    %v240 = vld [vmem:[#allocation7 + $0x50] sm:$0xff]
    %v241 = vld [vmem:[#allocation7 + $0x58] sm:$0xff]
    %v242 = vld [vmem:[#allocation7 + $0x60] sm:$0xff]
    %v243 = vld [vmem:[#allocation7 + $0x68] sm:$0xff]
    %v244 = vld [vmem:[#allocation7 + $0x70] sm:$0xff]
    %v245 = vld [vmem:[#allocation7 + $0x78] sm:$0xff]
    %v246 = vld [vmem:[%s6] sm:$0x1]
    %v247 = vld [vmem:[#allocation4] sm:$0xff]
    %v248 = vld [vmem:[#allocation4 + $0x8] sm:$0xff]
    %v249 = vld [vmem:[#allocation4 + $0x10] sm:$0xff]
    %v250 = vld [vmem:[#allocation4 + $0x18] sm:$0xff]
    %251 = vmatpush.msra.mxu0 %v245
    %252 = vmatpush.msra.mxu0 %v244
    %253 = vmatpush.msra.mxu0 %v243
    %254 = vmatpush.msra.mxu0 %v242
    %255 = vmatpush.msra.mxu0 %v241
    %256 = vmatpush.msra.mxu0 %v240
    %257 = vmatpush.msra.mxu0 %v239
    %258 = vmatpush.msra.mxu0 %v238
    %259 = vmatpush.msra.mxu0 %v237
    %260 = vmatpush.msra.mxu0 %v236
    %261 = vmatpush.msra.mxu0 %v235
    %262 = vmatpush.msra.mxu0 %v234
    %263 = vmatpush.msra.mxu0 %v233
    %264 = vmatpush.msra.mxu0 %v232
    %265 = vmatpush.msra.mxu0 %v231
    %266 = vmatpush.msra.mxu0 %v230
    %267 = vmatmul.f32.gmra.mxu0 %v247
    %v268 = vpop.f32.mrf.mxu0
    %v269 = vadd.f32 0.0, %v268
    %270 = vmatmul.f32.gmra.mxu0 %v248
    %v271 = vpop.f32.mrf.mxu0
    %v272 = vadd.f32 0.0, %v271
    %273 = vmatmul.f32.gmra.mxu0 %v249
    %v274 = vpop.f32.mrf.mxu0
    %v275 = vadd.f32 0.0, %v274
    %276 = vmatmul.f32.gmra.mxu0 %v250
    %v277 = vpop.f32.mrf.mxu0
    %v278 = vadd.f32 0.0, %v277
    %279 = vdwg.mxu0
    %280 = vst [vmem:[#allocation3] sm:$0xff] %v269
    %281 = vst [vmem:[#allocation3 + $0x8] sm:$0xff] %v272
    %282 = vst [vmem:[#allocation3 + $0x10] sm:$0xff] %v275
    %283 = vst [vmem:[#allocation3 + $0x18] sm:$0xff] %v278
    loop: start=0, step=1, limit=2
    $region44: #{tpu_custom_call.1} parent=1 // loop_pre_header
      _
    $region45: #{tpu_custom_call.1} parent=1 // loop_header
      %s285 = sphi 0, %s289
      %p286 = scmp.ge.s32.totalorder %s285, 2
    $region46: #{tpu_custom_call.1} parent=1 // loop_header_branch
      %288 = sbr.rel (%p286) target = $region50
    $region47: #{tpu_custom_call.1} parent=1 // loop_body
      %s290 = smul.u32 %s285, 16
      %s291 = scalar_lea.vmem [#allocation2], %s290
      %v292 = vld [vmem:[%s291] sm:$0xff]
      %v293 = vld [vmem:[%s291 + $0x8] sm:$0xff]
      %s294 = scalar_lea.vmem [#allocation3], %s290
      %v295 = vld [vmem:[%s294] sm:$0xff]
      %v296 = vld [vmem:[%s294 + $0x8] sm:$0xff]
      %s297 = smul.u32 0, 2
      %s298 = sadd.s32 %s297, %s285
      %s299 = sld [smem:[#allocation6 + %s298]]
      %v300 = vstv %s299
      %vm301 = vcmp.lt.s32.totalorder %v50, %v300
      %vm302 = vcmp.lt.s32.totalorder %v51, %v300
      %v303 = vsel %vm301, 1, 0
      %v304 = vsel %vm302, 1, 0
      %v305 = vcvt.s32.f32 %v303
      %v306 = vcvt.s32.f32 %v304
      %v308 = vperm.slane %v246, 0
      %vm310 = vcmask 130048
      %v312 = vsel %vm310, %v292, 0
      %v315 = vsel %vm310, %v293, 0
      %317 = vmatpush.msra.mxu0 0.0
      %318 = vmatpush.msra.mxu0 0.0
      %319 = vmatpush.msra.mxu0 0.0
      %320 = vmatpush.msra.mxu0 0.0
      %321 = vmatpush.msra.mxu0 0.0
      %322 = vmatpush.msra.mxu0 0.0
      %323 = vmatpush.msra.mxu0 0.0
      %324 = vmatpush.msra.mxu0 0.0
      %325 = vmatpush.msra.mxu0 0.0
      %326 = vmatpush.msra.mxu0 0.0
      %327 = vmatpush.msra.mxu0 0.0
      %328 = vmatpush.msra.mxu0 0.0
      %329 = vmatpush.msra.mxu0 0.0
      %330 = vmatpush.msra.mxu0 0.0
      %331 = vmatpush.msra.mxu0 %v296
      %332 = vmatpush.msra.mxu0 %v295
      %333 = vmatmul.f32.gmra.mxu0 %v312
      %v334 = vpop.f32.mrf.mxu0
      %v335 = vadd.f32 %v308, %v334
      %336 = vmatmul.f32.gmra.mxu0 %v315
      %v337 = vpop.f32.mrf.mxu0
      %v338 = vadd.f32 %v308, %v337
      %339 = vdwg.mxu0
      %v340 = vmul.f32 %v335, %v305
      %v341 = vmul.f32 %v338, %v306
      %v342 = vmax.f32 %v340, 0.0
      %v343 = vmax.f32 %v341, 0.0
      %s344 = scalar_lea.vmem [#allocation10], %s290
      %345 = vst [vmem:[%s344] sm:$0xff] %v342
      %346 = vst [vmem:[%s344 + $0x8] sm:$0xff] %v343
    $region48: #{tpu_custom_call.1} parent=1 // loop_footer
      %s289 = sadd.s32 1, %s285
    $region49: #{tpu_custom_call.1} parent=1 // loop_footer_branch
      %284 = sbr.rel target = $region45
    $region50: #{tpu_custom_call.1} parent=1 // loop_exit
      _
    // Predicated region
    $region51: #{tpu_custom_call.1} parent=1 // pred_check
      _
    $region52: #{tpu_custom_call.1} parent=1 // pred_check_branch
      %348 = sbr.rel (0) target = $region54
    $region53: #{tpu_custom_call.1} parent=1 // pred_region
      %350 = vsyncadd [#allocation9], 0
      %s351 = sshll.u32 [#allocation10], 4
      %s352 = int_to_ptr.vmem [resolvable:$true] %s351
      %s353 = sshll.u32 %s7, 4
      %s354 = int_to_ptr.hbm [resolvable:$true] %s353
      %359 = dma.vmem_to_hbm [thread:$0]  %s352, 512, %s354, [#allocation9], 128, 128, 8
    $region54: #{tpu_custom_call.1} parent=1 // pred_fallthru
      _
    // Predicated region
    $region55: #{tpu_custom_call.1} parent=1 // pred_check
      _
    $region56: #{tpu_custom_call.1} parent=1 // pred_check_branch
      %361 = sbr.rel (0) target = $region58
    $region57: #{tpu_custom_call.1} parent=1 // pred_region
      %363 = dma.done [#allocation9], 512
    $region58: #{tpu_custom_call.1} parent=1 // pred_fallthru
      _
    %364 = vsyncpa [#allocation8], 1
    %365 = vsyncpa [#allocation9], 1

</llo_original>
